<compile_context>
chip_gen: v6e
topology: v6e:2x2x1
jax: 0.10.0
libtpu: 0.0.40
codegen_flags: <defaults>
</compile_context>

<pallas_src>
import functools

import jax
import jax.numpy as jnp
from jax.experimental import pallas as pl
from jax.experimental.pallas import tpu as pltpu


def _cost_kernel(x_ref, rec_ref, labels_ref, caps_ref, out_ref, acc_ref,
                 *, alpha, lamb, m_minus, m_plus, inv_b, inv_bd):
    step = pl.program_id(0)
    last = pl.num_programs(0) - 1

    # ---- init accumulator on first tile --------------------------------
    @pl.when(step == 0)
    def _init():
        acc_ref[...] = jnp.zeros_like(acc_ref)

    # ---- streamed reconstruction term (pure VPU per tile) ---------------
    x = x_ref[...].astype(jnp.float32)         # (TR, 128), cast in-kernel
    r = rec_ref[...].astype(jnp.float32)       # (TR, 128)
    d = r - x
    acc_ref[...] += d * d                      # elementwise accumulate (VPU)

    # ---- finalize: one XLU reduce + tiny margin term + scalar store -----
    @pl.when(step == last)
    def _finalize():
        recon_cost = jnp.sum(acc_ref[...]) * inv_bd          # scalar

        caps = caps_ref[...].astype(jnp.float32)              # (B*NC, F)
        labels = labels_ref[...].astype(jnp.float32)           # (B*NC, 1)
        sq_norm = jnp.sum(caps * caps, axis=1, keepdims=True)  # (B*NC, 1)
        norms = jnp.sqrt(sq_norm)
        pos = labels * jnp.maximum(m_plus - norms, 0.0) ** 2
        neg = (1.0 - labels) * jnp.maximum(norms - m_minus, 0.0) ** 2
        margin_cost = jnp.sum(pos + lamb * neg) * inv_b        # scalar

        out_ref[0, 0] = margin_cost + alpha * recon_cost


def capsule_cost(input_data, labels, reconstructions, capsule_predictions,
                 *, alpha=0.0005, lamb=0.5, m_minus=0.1, m_plus=0.9,
                 tile_rows=1024):
    """Pallas implementation of CapsuleNetworkCostLayer.forward.

    input_data:           (B, C, H, W)   any float dtype (bf16 preferred)
    labels:               (B, n_classes)
    reconstructions:      (B, C, H, W)
    capsule_predictions:  (B, n_out_capsules, n_out_features)
    returns: scalar f32
    """
    b = input_data.shape[0]
    d = 1
    for s in input_data.shape[1:]:
        d *= s
    n_classes = labels.shape[1]
    n_feat = capsule_predictions.shape[2]

    # --- lane-dense (rows, 128) layout for the streamed MSE term ---------
    total = b * d
    n_rows = pl.cdiv(total, 128)
    tile_rows = max(8, min(tile_rows, ((n_rows + 7) // 8) * 8))
    rows_padded = pl.cdiv(n_rows, tile_rows) * tile_rows
    pad = rows_padded * 128 - total

    x_flat = input_data.reshape(-1)            # native dtype, no pre-cast
    rec_flat = reconstructions.reshape(-1)
    if pad:
        # zero padding of BOTH tensors -> diff = 0 -> no effect on the sum
        x_flat = jnp.pad(x_flat, (0, pad))
        rec_flat = jnp.pad(rec_flat, (0, pad))
    x2d = x_flat.reshape(rows_padded, 128)
    rec2d = rec_flat.reshape(rows_padded, 128)

    # --- small resident operands for the margin term ---------------------
    caps2d = capsule_predictions.reshape(b * n_classes, n_feat)
    labels2d = labels.reshape(b * n_classes, 1)

    num_tiles = rows_padded // tile_rows

    kernel = functools.partial(
        _cost_kernel,
        alpha=float(alpha), lamb=float(lamb),
        m_minus=float(m_minus), m_plus=float(m_plus),
        inv_b=1.0 / float(b), inv_bd=1.0 / float(b * d))

    in_itemsize = jnp.dtype(input_data.dtype).itemsize
    tile_bytes = tile_rows * 128 * in_itemsize
    acc_bytes = tile_rows * 128 * 4
    needed = 2 * 2 * tile_bytes + acc_bytes + 256 * 1024
    vmem_limit = int(min(32 * 1024 * 1024, max(4 * 1024 * 1024, 2 * needed)))

    cost_estimate = pl.CostEstimate(
        flops=3 * total + 6 * b * n_classes * n_feat,
        transcendentals=b * n_classes,
        bytes_accessed=(x2d.size + rec2d.size) * in_itemsize
        + caps2d.size * jnp.dtype(caps2d.dtype).itemsize
        + labels2d.size * jnp.dtype(labels2d.dtype).itemsize + 4,
    )

    out = pl.pallas_call(
        kernel,
        out_shape=jax.ShapeDtypeStruct((1, 1), jnp.float32),
        grid_spec=pltpu.PrefetchScalarGridSpec(
            num_scalar_prefetch=0,
            grid=(num_tiles,),
            in_specs=[
                pl.BlockSpec((tile_rows, 128), lambda i: (i, 0)),   # x tiles
                pl.BlockSpec((tile_rows, 128), lambda i: (i, 0)),   # rec tiles
                pl.BlockSpec((b * n_classes, 1), lambda i: (0, 0)),  # labels
                pl.BlockSpec((b * n_classes, n_feat), lambda i: (0, 0)),  # caps
            ],
            out_specs=pl.BlockSpec((1, 1), lambda i: (0, 0),
                                   memory_space=pltpu.SMEM),
            scratch_shapes=[pltpu.VMEM((tile_rows, 128), jnp.float32)],
        ),
        compiler_params=pltpu.CompilerParams(
            dimension_semantics=("arbitrary",),   # sequential accumulation
            vmem_limit_bytes=vmem_limit,
        ),
        cost_estimate=cost_estimate,
    )(x2d, rec2d, labels2d, caps2d)
    return out[0, 0]


def _reference_cost(input_data, labels, reconstructions, capsule_predictions,
                    *, alpha=0.0005, lamb=0.5, m_minus=0.1, m_plus=0.9):
    # pure-JAX reference mirroring the PyTorch module
    norms = jnp.linalg.norm(capsule_predictions.astype(jnp.float32), axis=2)
    labels = labels.astype(jnp.float32)
    pos = labels * jax.nn.relu(m_plus - norms) ** 2
    neg = (1 - labels) * jax.nn.relu(norms - m_minus) ** 2
    losses = jnp.sum(pos + lamb * neg, axis=1)
    margin = jnp.sum(losses) / losses.shape[0]

    b = input_data.shape[0]
    diff = (reconstructions.astype(jnp.float32)
            - input_data.astype(jnp.float32)).reshape(b, -1)
    sq = jnp.square(diff)
    rec_losses = jnp.sum(sq, axis=1) / sq.shape[1]
    recon = jnp.sum(rec_losses) / rec_losses.shape[0]
    return margin + alpha * recon


if __name__ == "__main__":
    key = jax.random.PRNGKey(0)
    k_x, k_rec, k_caps = jax.random.split(key, 3)

    B, C, H, W = 2, 4, 16, 16
    N_CLASSES, N_FEAT = 8, 16

    input_data = jax.random.normal(k_x, (B, C, H, W), dtype=jnp.float32)
    reconstructions = jax.random.normal(k_rec, (B, C, H, W), dtype=jnp.float32)
    capsule_predictions = 0.5 * jax.random.normal(
        k_caps, (B, N_CLASSES, N_FEAT), dtype=jnp.float32)
    # deterministic one-hot labels: sample b -> class (b % N_CLASSES)
    labels = jax.nn.one_hot(jnp.arange(B) % N_CLASSES, N_CLASSES,
                            dtype=jnp.float32)

    # small tile_rows so the demo exercises the multi-step gridded
    # init / accumulate / finalize path (2048 elems -> 16 rows -> 2 tiles)
    cost = capsule_cost(input_data, labels, reconstructions,
                        capsule_predictions, tile_rows=8)
    cost = jax.block_until_ready(cost)

    ref = _reference_cost(input_data, labels, reconstructions,
                          capsule_predictions)
    assert jnp.allclose(cost, ref, rtol=1e-5, atol=1e-5), (cost, ref)

    print("KERNEL_OK")
</pallas_src>

<mosaic_0001>
module attributes {stable_mosaic.version = 11 : i64} {
  func.func @_cost_kernel(%arg0: i32, %arg1: memref<8x128xf32, #tpu.memory_space<vmem>>, %arg2: memref<8x128xf32, #tpu.memory_space<vmem>>, %arg3: memref<16x1xf32, #tpu.memory_space<vmem>>, %arg4: memref<16x16xf32, #tpu.memory_space<vmem>>, %arg5: memref<1x1xf32, #tpu.memory_space<smem>>, %arg6: memref<8x128xf32, #tpu.memory_space<vmem>>) attributes {dimension_semantics = [#tpu.dimension_semantics<arbitrary>], iteration_bounds = array<i64: 2>, scalar_prefetch = 0 : i64, scratch_operands = 1 : i64, tpu.core_type = #tpu.core_type<tc>, window_params = [{transform_indices = @transform_0, window_bounds = array<i64: 8, 128>}, {transform_indices = @transform_1, window_bounds = array<i64: 8, 128>}, {pipeline_mode = #tpu.pipeline_mode<synchronous>, transform_indices = @transform_2, window_bounds = array<i64: 16, 1>}, {pipeline_mode = #tpu.pipeline_mode<synchronous>, transform_indices = @transform_3, window_bounds = array<i64: 16, 16>}, {transform_indices = @transform_4, window_bounds = array<i64: 1, 1>}]} {
    %c0_i32 = arith.constant 0 : i32
    %0 = arith.cmpi eq, %arg0, %c0_i32 : i32
    %1 = arith.extui %0 : i1 to i32
    %c0_i32_0 = arith.constant 0 : i32
    %2 = arith.cmpi ne, %1, %c0_i32_0 : i32
    scf.if %2 {
      %cst = arith.constant 0.000000e+00 : f32
      %13 = vector.broadcast %cst : f32 to vector<8x128xf32>
      %c0_9 = arith.constant 0 : index
      %c0_10 = arith.constant 0 : index
      %14 = vector.load %arg6[%c0_9, %c0_10] : memref<8x128xf32, #tpu.memory_space<vmem>>, vector<8x128xf32>
      tpu.vector_store %arg6[%c0_9, %c0_10], %13 {strides = array<i32>} : memref<8x128xf32, #tpu.memory_space<vmem>>, vector<8x128xf32>,
    } else {
    }
    %c0 = arith.constant 0 : index
    %c0_1 = arith.constant 0 : index
    %3 = vector.load %arg1[%c0, %c0_1] : memref<8x128xf32, #tpu.memory_space<vmem>>, vector<8x128xf32>
    %c0_2 = arith.constant 0 : index
    %c0_3 = arith.constant 0 : index
    %4 = vector.load %arg2[%c0_2, %c0_3] : memref<8x128xf32, #tpu.memory_space<vmem>>, vector<8x128xf32>
    %5 = arith.subf %4, %3 : vector<8x128xf32>
    %c0_4 = arith.constant 0 : index
    %c0_5 = arith.constant 0 : index
    %6 = vector.load %arg6[%c0_4, %c0_5] : memref<8x128xf32, #tpu.memory_space<vmem>>, vector<8x128xf32>
    %7 = arith.mulf %5, %5 : vector<8x128xf32>
    %8 = arith.addf %6, %7 : vector<8x128xf32>
    %c0_6 = arith.constant 0 : index
    %c0_7 = arith.constant 0 : index
    %9 = vector.load %arg6[%c0_6, %c0_7] : memref<8x128xf32, #tpu.memory_space<vmem>>, vector<8x128xf32>
    tpu.vector_store %arg6[%c0_6, %c0_7], %8 {strides = array<i32>} : memref<8x128xf32, #tpu.memory_space<vmem>>, vector<8x128xf32>,
    %c1_i32 = arith.constant 1 : i32
    %10 = arith.cmpi eq, %arg0, %c1_i32 : i32
    %11 = arith.extui %10 : i1 to i32
    %c0_i32_8 = arith.constant 0 : i32
    %12 = arith.cmpi ne, %11, %c0_i32_8 : i32
    scf.if %12 {
      %c0_9 = arith.constant 0 : index
      %c0_10 = arith.constant 0 : index
      %13 = vector.load %arg6[%c0_9, %c0_10] : memref<8x128xf32, #tpu.memory_space<vmem>>, vector<8x128xf32>
      %14 = vector.shape_cast %13 : vector<8x128xf32> to vector<1x8x128xf32>
      %cst = arith.constant dense<0.000000e+00> : vector<1xf32>
      %15 = vector.multi_reduction <add>, %14, %cst [1, 2] : vector<1x8x128xf32> to vector<1xf32>
      %16 = vector.shape_cast %15 : vector<1xf32> to vector<1x1x1xf32>
      %17 = vector.extract %16[0, 0, 0] : f32 from vector<1x1x1xf32>
      %cst_11 = arith.constant 4.8828125E-4 : f32
      %18 = arith.mulf %17, %cst_11 : f32
      %c0_12 = arith.constant 0 : index
      %c0_13 = arith.constant 0 : index
      %19 = vector.load %arg4[%c0_12, %c0_13] : memref<16x16xf32, #tpu.memory_space<vmem>>, vector<16x16xf32>
      %c0_14 = arith.constant 0 : index
      %c0_15 = arith.constant 0 : index
      %20 = vector.load %arg3[%c0_14, %c0_15] : memref<16x1xf32, #tpu.memory_space<vmem>>, vector<16x1xf32>
      %21 = arith.mulf %19, %19 : vector<16x16xf32>
      %cst_16 = arith.constant dense<0.000000e+00> : vector<16xf32>
      %22 = vector.multi_reduction <add>, %21, %cst_16 [1] : vector<16x16xf32> to vector<16xf32>
      %23 = vector.shape_cast %22 : vector<16xf32> to vector<16x1xf32>
      %24 = math.sqrt %23 : vector<16x1xf32>
      %cst_17 = arith.constant 0.899999976 : f32
      %25 = vector.broadcast %cst_17 : f32 to vector<16x1xf32>
      %26 = arith.subf %25, %24 : vector<16x1xf32>
      %cst_18 = arith.constant 0.000000e+00 : f32
      %27 = vector.broadcast %cst_18 : f32 to vector<16x1xf32>
      %28 = arith.maximumf %26, %27 : vector<16x1xf32>
      %29 = arith.mulf %28, %28 : vector<16x1xf32>
      %30 = arith.mulf %20, %29 : vector<16x1xf32>
      %cst_19 = arith.constant 1.000000e+00 : f32
      %31 = vector.broadcast %cst_19 : f32 to vector<16x1xf32>
      %32 = arith.subf %31, %20 : vector<16x1xf32>
      %cst_20 = arith.constant 1.000000e-01 : f32
      %33 = vector.broadcast %cst_20 : f32 to vector<16x1xf32>
      %34 = arith.subf %24, %33 : vector<16x1xf32>
      %cst_21 = arith.constant 0.000000e+00 : f32
      %35 = vector.broadcast %cst_21 : f32 to vector<16x1xf32>
      %36 = arith.maximumf %34, %35 : vector<16x1xf32>
      %37 = arith.mulf %36, %36 : vector<16x1xf32>
      %38 = arith.mulf %32, %37 : vector<16x1xf32>
      %cst_22 = arith.constant 5.000000e-01 : f32
      %39 = vector.broadcast %cst_22 : f32 to vector<16x1xf32>
      %40 = arith.mulf %39, %38 : vector<16x1xf32>
      %41 = arith.addf %30, %40 : vector<16x1xf32>
      %42 = vector.shape_cast %41 : vector<16x1xf32> to vector<1x16x1xf32>
      %cst_23 = arith.constant dense<0.000000e+00> : vector<1xf32>
      %43 = vector.multi_reduction <add>, %42, %cst_23 [1, 2] : vector<1x16x1xf32> to vector<1xf32>
      %44 = vector.shape_cast %43 : vector<1xf32> to vector<1x1x1xf32>
      %45 = vector.extract %44[0, 0, 0] : f32 from vector<1x1x1xf32>
      %cst_24 = arith.constant 5.000000e-01 : f32
      %46 = arith.mulf %45, %cst_24 : f32
      %cst_25 = arith.constant 5.000000e-04 : f32
      %47 = arith.mulf %cst_25, %18 : f32
      %48 = arith.addf %46, %47 : f32
      %c0_26 = arith.constant 0 : index
      %c0_27 = arith.constant 0 : index
      %49 = memref.load %arg5[%c0_26, %c0_27] : memref<1x1xf32, #tpu.memory_space<smem>>
      memref.store %48, %arg5[%c0_26, %c0_27] : memref<1x1xf32, #tpu.memory_space<smem>>
    } else {
    }
    return
  }
  func.func @transform_0(%arg0: i32) -> (i32, i32) {
    %c0_i32 = arith.constant 0 : i32
    %c0_i32_0 = arith.constant 0 : i32
    return %arg0, %c0_i32 : i32, i32
  }
  func.func @transform_1(%arg0: i32) -> (i32, i32) {
    %c0_i32 = arith.constant 0 : i32
    %c0_i32_0 = arith.constant 0 : i32
    return %arg0, %c0_i32 : i32, i32
  }
  func.func @transform_2(%arg0: i32) -> (i32, i32) {
    %c0_i32 = arith.constant 0 : i32
    %c0_i32_0 = arith.constant 0 : i32
    %c0_i32_1 = arith.constant 0 : i32
    return %c0_i32, %c0_i32_0 : i32, i32
  }
  func.func @transform_3(%arg0: i32) -> (i32, i32) {
    %c0_i32 = arith.constant 0 : i32
    %c0_i32_0 = arith.constant 0 : i32
    %c0_i32_1 = arith.constant 0 : i32
    return %c0_i32, %c0_i32_0 : i32, i32
  }
  func.func @transform_4(%arg0: i32) -> (i32, i32) {
    %c0_i32 = arith.constant 0 : i32
    %c0_i32_0 = arith.constant 0 : i32
    %c0_i32_1 = arith.constant 0 : i32
    return %c0_i32, %c0_i32_0 : i32, i32
  }
}

</mosaic_0001>

<llo_original>
// kernel: tpu_custom_call.1
$region0: #{tpu_custom_call.1}
  #allocation0 [shape = 'u32[]', space=smem, size = 0x4, offset = 0x4, fixed_abs, tag = 'smem constant byte address 0x4 - core index']
  #allocation1 [shape = 'u32[144,128]{1,0:T(1,128)}', space=vmem, size = 0x12000, scoped, tag = 'internal scratch']
  #allocation2 [shape = 'f32[8,128]{1,0:T(8,128)}', space=vmem, size = 0x1000, scoped, tag = 'scratch operand']
  %s0 = inlined_call_operand.vmem [shape: f32[16,128], index: 0, kind: input, shape index: {}]
  %s1 = inlined_call_operand.hbm [shape: f32[16,128], index: 1, kind: input, shape index: {}]
  %s2 = inlined_call_operand.vmem [shape: f32[16,1], index: 2, kind: input, shape index: {}]
  %s3 = inlined_call_operand.hbm [shape: f32[16,16], index: 3, kind: input, shape index: {}]
  %s4 = inlined_call_operand.hbm [shape: f32[1,1], index: 4, kind: output, shape index: {}]
  %s5 = sld [smem:[#allocation0]]
  $region65: #{tpu_custom_call.1} parent=0
    _
  %s7 = ssub.s32 1, %s5
  %s8 = scalar_select 0, %s7, %s5
  $region1: #{tpu_custom_call.1} parent=0
    #allocation3 [shape = 'u8[8192]{0}', space=vmem, size = 0x2000, scoped, tag = 'input window, operand 1']
    #allocation4 [shape = 's32[2]{0}', space=sflag, size = 0x8, scoped, tag = 'scoped memory for tpu_custom_call.1']
    #allocation5 [shape = 's32[2]{0}', space=sflag, size = 0x8, scoped, tag = 'scoped memory for tpu_custom_call.1']
    #allocation6 [shape = 'u8[8192]{0}', space=vmem, size = 0x2000, scoped, tag = 'input window, operand 3, single buffered']
    #allocation7 [shape = 's32[1]{0}', space=sflag, size = 0x4, scoped, tag = 'scoped memory for tpu_custom_call.1']
    #allocation8 [shape = 'u8[512]{0}', space=smem, size = 0x200, scoped, tag = 'output window, operand 0, single buffered']
    %9 = vsyncpa [#allocation4], 0
    %s10 = scalar_lea.sflag [#allocation4], 1
    %11 = vsyncpa %s10, 0
    %12 = vsyncpa [#allocation7], 0
    %13 = vsyncpa [#allocation5], 0
    loop: start=0, step=1, limit=4
    $region2: #{tpu_custom_call.1} parent=1 // loop_pre_header
      _
    $region3: #{tpu_custom_call.1} parent=1 // loop_header
      %s15 = sphi 0, %s19
      %p16 = scmp.ge.s32.totalorder %s15, 4
      %s25 = sphi 0, %s27
      %s28 = sphi 0, %s25
      %s29 = sphi 0, %s28
      %s45 = sphi 0, %s29
      %s51 = sphi 0, %s53
      %s54 = sphi 0, %s51
      %s55 = sphi 0, %s54
      %s71 = sphi 0, %s55
      %s75 = sphi 0, %s75
      %s77 = sphi 0, %s75
      %s78 = sphi 0, %s77
      %s92 = sphi 0, %s78
      %s96 = sphi 0, %s96
      %s98 = sphi 0, %s96
      %s99 = sphi 0, %s98
      %s113 = sphi 0, %s99
      %s117 = sphi 0, %s117
      %s119 = sphi 0, %s117
      %s120 = sphi 0, %s119
      %s134 = sphi 0, %s120
    $region4: #{tpu_custom_call.1} parent=1 // loop_header_branch
      %18 = sbr.rel (%p16) target = $region8
    $region5: #{tpu_custom_call.1} parent=1 // loop_body
      %s20 = ssub.s32 %s15, 1
      %s21 = ssub.s32 %s15, 2
      %s22 = sadd.s32 %s15, 1
      %s23 = ssub.s32 %s15, %s22
      %p24 = scmp.eq.s32.totalorder %s23, 0
      %s26 = sadd.s32 %s25, 1
      %s27 = scalar_select %p24, %s25, %s26
      %p30 = pneg %p24
      %p31 = scmp.eq.s32.totalorder %s15, 1
      %p32 = por %p30, %p31
      %p33 = scmp.ne.s32.totalorder %s25, %s28
      %p34 = scmp.eq.s32.totalorder %s15, 0
      %p35 = por %p33, %p34
      %p36 = scmp.ne.s32.totalorder %s25, %s28
      %p37 = scmp.eq.s32.totalorder %s20, 1
      %p38 = por %p36, %p37
      %p39 = scmp.ne.s32.totalorder %s28, %s29
      %p40 = scmp.eq.s32.totalorder %s20, 0
      %p41 = por %p39, %p40
      %p42 = scmp.ne.s32.totalorder %s28, %s29
      %p43 = scmp.eq.s32.totalorder %s21, 1
      %p44 = por %p42, %p43
      %p46 = scmp.ne.s32.totalorder %s29, %s45
      %p47 = scmp.eq.s32.totalorder %s21, 0
      %p48 = por %p46, %p47
      %s49 = ssub.s32 %s15, %s22
      %p50 = scmp.eq.s32.totalorder %s49, 0
      %s52 = sadd.s32 %s51, 1
      %s53 = scalar_select %p50, %s51, %s52
      %p56 = pneg %p50
      %p57 = scmp.eq.s32.totalorder %s15, 1
      %p58 = por %p56, %p57
      %p59 = scmp.ne.s32.totalorder %s51, %s54
      %p60 = scmp.eq.s32.totalorder %s15, 0
      %p61 = por %p59, %p60
      %p62 = scmp.ne.s32.totalorder %s51, %s54
      %p63 = scmp.eq.s32.totalorder %s20, 1
      %p64 = por %p62, %p63
      %p65 = scmp.ne.s32.totalorder %s54, %s55
      %p66 = scmp.eq.s32.totalorder %s20, 0
      %p67 = por %p65, %p66
      %p68 = scmp.ne.s32.totalorder %s54, %s55
      %p69 = scmp.eq.s32.totalorder %s21, 1
      %p70 = por %p68, %p69
      %p72 = scmp.ne.s32.totalorder %s55, %s71
      %p73 = scmp.eq.s32.totalorder %s21, 0
      %p74 = por %p72, %p73
      %s76 = sadd.s32 %s75, 1
      %p79 = scmp.eq.s32.totalorder %s15, 1
      %p80 = scmp.ne.s32.totalorder %s75, %s77
      %p81 = scmp.eq.s32.totalorder %s15, 0
      %p82 = por %p80, %p81
      %p83 = scmp.ne.s32.totalorder %s75, %s77
      %p84 = scmp.eq.s32.totalorder %s20, 1
      %p85 = por %p83, %p84
      %p86 = scmp.ne.s32.totalorder %s77, %s78
      %p87 = scmp.eq.s32.totalorder %s20, 0
      %p88 = por %p86, %p87
      %p89 = scmp.ne.s32.totalorder %s77, %s78
      %p90 = scmp.eq.s32.totalorder %s21, 1
      %p91 = por %p89, %p90
      %p93 = scmp.ne.s32.totalorder %s78, %s92
      %p94 = scmp.eq.s32.totalorder %s21, 0
      %p95 = por %p93, %p94
      %s97 = sadd.s32 %s96, 1
      %p100 = scmp.eq.s32.totalorder %s15, 1
      %p101 = scmp.ne.s32.totalorder %s96, %s98
      %p102 = scmp.eq.s32.totalorder %s15, 0
      %p103 = por %p101, %p102
      %p104 = scmp.ne.s32.totalorder %s96, %s98
      %p105 = scmp.eq.s32.totalorder %s20, 1
      %p106 = por %p104, %p105
      %p107 = scmp.ne.s32.totalorder %s98, %s99
      %p108 = scmp.eq.s32.totalorder %s20, 0
      %p109 = por %p107, %p108
      %p110 = scmp.ne.s32.totalorder %s98, %s99
      %p111 = scmp.eq.s32.totalorder %s21, 1
      %p112 = por %p110, %p111
      %p114 = scmp.ne.s32.totalorder %s99, %s113
      %p115 = scmp.eq.s32.totalorder %s21, 0
      %p116 = por %p114, %p115
      %s118 = sadd.s32 %s117, 1
      %p121 = scmp.eq.s32.totalorder %s15, 1
      %p122 = scmp.ne.s32.totalorder %s117, %s119
      %p123 = scmp.eq.s32.totalorder %s15, 0
      %p124 = por %p122, %p123
      %p125 = scmp.ne.s32.totalorder %s117, %s119
      %p126 = scmp.eq.s32.totalorder %s20, 1
      %p127 = por %p125, %p126
      %p128 = scmp.ne.s32.totalorder %s119, %s120
      %p129 = scmp.eq.s32.totalorder %s20, 0
      %p130 = por %p128, %p129
      %p131 = scmp.ne.s32.totalorder %s119, %s120
      %p132 = scmp.eq.s32.totalorder %s21, 1
      %p133 = por %p131, %p132
      %p135 = scmp.ne.s32.totalorder %s120, %s134
      %p136 = scmp.eq.s32.totalorder %s21, 0
      %p137 = por %p135, %p136
      %p138 = scmp.le.s32.totalorder 1, %s15
      %p139 = scmp.lt.s32.totalorder %s15, 3
      %p140 = pnand %p138, %p139
      %p141 = pneg %p140
      // Predicated region
      $region9: #{tpu_custom_call.1} parent=5 // pred_check
        _
      $region10: #{tpu_custom_call.1} parent=5 // pred_check_branch
        %143 = sbr.rel (%p140) target = $region12
      $region11: #{tpu_custom_call.1} parent=5 // pred_region
        %s144 = ssub.s32 %s15, 1
        // Predicated region
        $region13: #{tpu_custom_call.1} parent=11 // pred_check
          %p145 = pneg %p88
        $region14: #{tpu_custom_call.1} parent=11 // pred_check_branch
          %147 = sbr.rel (%p145) target = $region16
        $region15: #{tpu_custom_call.1} parent=11 // pred_region
          _
        $region16: #{tpu_custom_call.1} parent=11 // pred_fallthru
          _
        // Predicated region
        $region17: #{tpu_custom_call.1} parent=11 // pred_check
          %p148 = pneg %p109
        $region18: #{tpu_custom_call.1} parent=11 // pred_check_branch
          %150 = sbr.rel (%p148) target = $region20
        $region19: #{tpu_custom_call.1} parent=11 // pred_region
          %s152 = ssub.s32 256, 256
          %153 = vsyncadd [#allocation7], %s152
          %s154 = sshll.u32 [#allocation6], 4
          %s155 = int_to_ptr.vmem [resolvable:$true] %s154
          %160 = dma.hbm_to_vmem [thread:$0]  %s3, 256, %s155, [#allocation7], 128, 128, 8
        $region20: #{tpu_custom_call.1} parent=11 // pred_fallthru
          _
      $region12: #{tpu_custom_call.1} parent=5 // pred_fallthru
        _
      %p161 = scmp.lt.s32.totalorder %s15, 2
      // Predicated region
      $region21: #{tpu_custom_call.1} parent=5 // pred_check
        %p162 = pneg %p161
      $region22: #{tpu_custom_call.1} parent=5 // pred_check_branch
        %164 = sbr.rel (%p162) target = $region24
      $region23: #{tpu_custom_call.1} parent=5 // pred_region
        // Predicated region
        $region25: #{tpu_custom_call.1} parent=23 // pred_check
          %p165 = pneg %p35
        $region26: #{tpu_custom_call.1} parent=23 // pred_check_branch
          %167 = sbr.rel (%p165) target = $region28
        $region27: #{tpu_custom_call.1} parent=23 // pred_region
          %p168 = scmp.lt.s32.totalorder %s15, 1
          %s169 = scalar_select %p168, %s15, 1
          %s170 = smul.addr %s169, 8
          %s171 = scalar_lea.vmem %s0, %s170
        $region28: #{tpu_custom_call.1} parent=23 // pred_fallthru
          _
        // Predicated region
        $region29: #{tpu_custom_call.1} parent=23 // pred_check
          %p172 = pneg %p61
        $region30: #{tpu_custom_call.1} parent=23 // pred_check_branch
          %174 = sbr.rel (%p172) target = $region32
        $region31: #{tpu_custom_call.1} parent=23 // pred_region
          %s175 = sand.u32 %s51, 1
          %s176 = scalar_lea.sflag [#allocation4], %s175
          %s177 = sand.u32 %s51, 1
          %s178 = smul.addr %s177, 8
          %s179 = scalar_lea.vmem [#allocation3], %s178
          %s181 = ssub.s32 128, 128
          %182 = vsyncadd %s176, %s181
          %s183 = smul.addr %s15, 128
          %s184 = scalar_lea.hbm %s1, %s183
          %s186 = sshll.u32 %s179, 4
          %s187 = int_to_ptr.vmem [resolvable:$true] %s186
          %189 = dma.hbm_to_vmem [thread:$0]  %s184, 128, %s187, %s176
        $region32: #{tpu_custom_call.1} parent=23 // pred_fallthru
          _
      $region24: #{tpu_custom_call.1} parent=5 // pred_fallthru
        _
      %p190 = scmp.le.s32.totalorder 1, %s15
      %p191 = scmp.lt.s32.totalorder %s15, 3
      %p192 = pnand %p190, %p191
      %p193 = pneg %p192
      // Predicated region
      $region33: #{tpu_custom_call.1} parent=5 // pred_check
        _
      $region34: #{tpu_custom_call.1} parent=5 // pred_check_branch
        %195 = sbr.rel (%p192) target = $region36
      $region35: #{tpu_custom_call.1} parent=5 // pred_region
        %s196 = ssub.s32 %s15, 1
        %s197 = sand.u32 %s54, 1
        %s198 = scalar_lea.sflag [#allocation4], %s197
        %s199 = sand.u32 %s54, 1
        %s200 = smul.addr %s199, 8
        %s201 = scalar_lea.vmem [#allocation3], %s200
        // Predicated region
        $region37: #{tpu_custom_call.1} parent=35 // pred_check
          %p202 = pneg %p67
        $region38: #{tpu_custom_call.1} parent=35 // pred_check_branch
          %204 = sbr.rel (%p202) target = $region40
        $region39: #{tpu_custom_call.1} parent=35 // pred_region
          %205 = dma.done %s198, 128
        $region40: #{tpu_custom_call.1} parent=35 // pred_fallthru
          _
        // Predicated region
        $region41: #{tpu_custom_call.1} parent=35 // pred_check
          %p206 = pneg %p109
        $region42: #{tpu_custom_call.1} parent=35 // pred_check_branch
          %208 = sbr.rel (%p206) target = $region44
        $region43: #{tpu_custom_call.1} parent=35 // pred_region
          %209 = dma.done [#allocation7], 256
        $region44: #{tpu_custom_call.1} parent=35 // pred_fallthru
          _
        %p210 = scmp.lt.s32.totalorder %s20, 1
        %s211 = scalar_select %p210, %s20, 1
        %s212 = smul.addr %s211, 8
        %s213 = scalar_lea.vmem %s0, %s212
        %p214 = pneg %p41
        %p215 = pneg %p38
        %s216 = sand.u32 %s54, 1
        %s217 = scalar_lea.sflag [#allocation4], %s216
        %s218 = sand.u32 %s54, 1
        %s219 = smul.addr %s218, 8
        %s220 = scalar_lea.vmem [#allocation3], %s219
        %p221 = pneg %p67
        %p222 = pneg %p64
        %p223 = pneg %p88
        %p224 = pneg %p85
        %p225 = pneg %p109
        %p226 = pneg %p106
        %p227 = pneg %p130
        %p228 = pneg %p127
        %p229 = scmp.lt.s32.totalorder %s20, 1
        %s230 = scalar_select %p229, %s20, 1
        %s231 = smul.addr %s230, 8
        %s232 = scalar_lea.vmem %s0, %s231
        %p233 = scmp.eq.s32.totalorder %s20, 0
        // Predicated region
        $region45: #{tpu_custom_call.1} parent=35 // pred_check
          %p234 = pneg %p233
        $region46: #{tpu_custom_call.1} parent=35 // pred_check_branch
          %236 = sbr.rel (%p234) target = $region48
        $region47: #{tpu_custom_call.1} parent=35 // pred_region
          %237 = vst [vmem:[#allocation2] sm:$0xff] 0.0
        $region48: #{tpu_custom_call.1} parent=35 // pred_fallthru
          _
        %v238 = vld [vmem:[%s232] sm:$0xff]
        %v239 = vld [vmem:[%s201] sm:$0xff]
        %v240 = vsub.f32 %v239, %v238
        %v241 = vld [vmem:[#allocation2] sm:$0xff]
        %v242 = vmul.f32 %v240, %v240
        %v243 = vadd.f32 %v241, %v242
        %244 = vst [vmem:[#allocation2] sm:$0xff] %v243
        %p245 = scmp.eq.s32.totalorder %s20, 1
        // Predicated region
        $region49: #{tpu_custom_call.1} parent=35 // pred_check
          %p246 = pneg %p245
        $region50: #{tpu_custom_call.1} parent=35 // pred_check_branch
          %248 = sbr.rel (%p246) target = $region52
        $region51: #{tpu_custom_call.1} parent=35 // pred_region
          %v249 = vld [vmem:[#allocation2] sm:$0xff]
          %250 = vadd.xlane.f32.xlu0 %v249
          %v251 = vpop.xlane.xlu0 %250
          %v252 = vrot.slane %v251, 4
          %v253 = vadd.f32 %v251, %v252
          %v254 = vrot.slane %v253, 2
          %v255 = vadd.f32 %v253, %v254
          %v256 = vrot.slane %v255, 1
          %v257 = vadd.f32 %v255, %v256
          %s258 = vtos %v257
          %s259 = smul.f32 %s258, 0.00048828125
          %v260 = vld [vmem:[#allocation6] sm:$0xff]
          %v261 = vld [vmem:[#allocation6 + $0x8] sm:$0xff]
          %v262 = vld [vmem:[%s2] sm:$0xff]
          %v263 = vld [vmem:[%s2 + $0x8] sm:$0xff]
          %v264 = vmul.f32 %v260, %v260
          %v265 = vmul.f32 %v261, %v261
          %vm266 = vcmask 130048
          %v267 = vsel %vm266, %v264, 0.0
          %268 = vadd.xlane.f32.xlu0 %v267
          %v269 = vpop.xlane.xlu0 %268
          %v270 = vsel %vm266, %v265, 0.0
          %271 = vadd.xlane.f32.xlu0 %v270
          %v272 = vpop.xlane.xlu0 %271
          %v273 = vrsqrt.pop %v269
          %v274 = vmul.f32 %v269, %v273
          %vm275 = vcmp.eq.f32.partialorder %v269, inf
          %v276 = vsel %vm275, %v269, %v274
          %vm277 = vcmp.eq.f32.partialorder %v269, 0.0
          %v278 = vand.u32 %v269, 2147483648
          %v279 = vsel %vm277, %v278, %v276
          %v280 = vrsqrt.pop %v272
          %v281 = vmul.f32 %v272, %v280
          %vm282 = vcmp.eq.f32.partialorder %v272, inf
          %v283 = vsel %vm282, %v272, %v281
          %vm284 = vcmp.eq.f32.partialorder %v272, 0.0
          %v285 = vand.u32 %v272, 2147483648
          %v286 = vsel %vm284, %v285, %v283
          %v287 = vsub.f32 0.9, %v279
          %v288 = vsub.f32 0.9, %v286
          %v289 = vmax.f32 %v287, 0.0
          %v290 = vmax.f32 %v288, 0.0
          %v291 = vmul.f32 %v289, %v289
          %v292 = vmul.f32 %v290, %v290
          %v293 = vmul.f32 %v262, %v291
          %v294 = vmul.f32 %v263, %v292
          %v295 = vsub.f32 1.0, %v262
          %v296 = vsub.f32 1.0, %v263
          %v297 = vsub.f32 %v279, 0.1
          %v298 = vsub.f32 %v286, 0.1
          %v299 = vmax.f32 %v297, 0.0
          %v300 = vmax.f32 %v298, 0.0
          %v301 = vmul.f32 %v299, %v299
          %v302 = vmul.f32 %v300, %v300
          %v303 = vmul.f32 %v295, %v301
          %v304 = vmul.f32 %v296, %v302
          %v305 = vmul.f32 %v303, 0.5
          %v306 = vmul.f32 %v304, 0.5
          %v307 = vadd.f32 %v293, %v305
          %v308 = vadd.f32 %v294, %v306
          %vm309 = vcmask 7168
          %v310 = vsel %vm309, %v307, 0.0
          %v311 = vsel %vm309, %v308, 0.0
          %v312 = vadd.f32 %v310, %v311
          %313 = vadd.xlane.f32.xlu0 %v312
          %v314 = vpop.xlane.xlu0 %313
          %v315 = vrot.slane %v314, 4
          %v316 = vadd.f32 %v314, %v315
          %v317 = vrot.slane %v316, 2
          %v318 = vadd.f32 %v316, %v317
          %v319 = vrot.slane %v318, 1
          %v320 = vadd.f32 %v318, %v319
          %s321 = vtos %v320
          %s322 = smul.f32 %s321, 0.5
          %s323 = smul.f32 %s259, 0.0005
          %s324 = sadd.f32 %s322, %s323
          %s325 = scalar_lea.smem [#allocation8], 0
          %326 = sst [smem:[%s325]] %s324
        $region52: #{tpu_custom_call.1} parent=35 // pred_fallthru
          _
        // Predicated region
        $region53: #{tpu_custom_call.1} parent=35 // pred_check
          %p327 = pneg %p127
        $region54: #{tpu_custom_call.1} parent=35 // pred_check_branch
          %329 = sbr.rel (%p327) target = $region56
        $region55: #{tpu_custom_call.1} parent=35 // pred_region
          %s331 = ssub.s32 16, 16
          %332 = vsyncadd [#allocation5], %s331
          %335 = dma.smem_to_hbm [#allocation8], 16, %s4, [#allocation5]
        $region56: #{tpu_custom_call.1} parent=35 // pred_fallthru
          _
        // Predicated region
        $region57: #{tpu_custom_call.1} parent=35 // pred_check
          %p336 = pneg %p127
        $region58: #{tpu_custom_call.1} parent=35 // pred_check_branch
          %338 = sbr.rel (%p336) target = $region60
        $region59: #{tpu_custom_call.1} parent=35 // pred_region
          %339 = dma.done [#allocation5], 16
        $region60: #{tpu_custom_call.1} parent=35 // pred_fallthru
          _
        %340 = sfence
      $region36: #{tpu_custom_call.1} parent=5 // pred_fallthru
        _
      %p341 = scmp.le.s32.totalorder 2, %s15
      // Predicated region
      $region61: #{tpu_custom_call.1} parent=5 // pred_check
        %p342 = pneg %p341
      $region62: #{tpu_custom_call.1} parent=5 // pred_check_branch
        %344 = sbr.rel (%p342) target = $region64
      $region63: #{tpu_custom_call.1} parent=5 // pred_region
        %s345 = ssub.s32 %s15, 2
      $region64: #{tpu_custom_call.1} parent=5 // pred_fallthru
        _
    $region6: #{tpu_custom_call.1} parent=1 // loop_footer
      %s19 = sadd.s32 1, %s15
    $region7: #{tpu_custom_call.1} parent=1 // loop_footer_branch
      %14 = sbr.rel target = $region3
    $region8: #{tpu_custom_call.1} parent=1 // loop_exit
      _
    %346 = vsyncpa [#allocation4], 1
    %s347 = scalar_lea.sflag [#allocation4], 1
    %348 = vsyncpa %s347, 1
    %349 = vsyncpa [#allocation7], 1
    %350 = vsyncpa [#allocation5], 1
    %s351 = scalar_lea.sflag [#allocation5], 1
    %352 = vsyncpa %s351, 1

</llo_original>
